<compile_context>
chip_gen: v5e
topology: v5e:2x2
jax: 0.10.0
libtpu: 0.0.40
codegen_flags: <defaults>
</compile_context>

<pallas_src>
import functools

import jax
import jax.numpy as jnp
from jax.experimental import pallas as pl
from jax.experimental.pallas import tpu as pltpu

LANE = 128  # native lane / MXU column width


def _round_up(x, m):
    return ((x + m - 1) // m) * m


def _mlp_kernel(noise_ref, w1_ref, b1_ref, w2_ref, b2_ref, out_ref):
    # Cast f32 noise -> bf16 in-kernel (hidden under the input DMA).
    x = noise_ref[...].astype(jnp.bfloat16)
    # fc1: bf16 inputs, f32 MXU accumulate; bias + ReLU in f32.
    h = jnp.dot(x, w1_ref[...], preferred_element_type=jnp.float32) + b1_ref[...]
    h = jnp.maximum(h, 0.0)
    # fc2: bf16 inputs, f32 accumulate; bias + sigmoid in f32; narrow store.
    y = jnp.dot(h.astype(jnp.bfloat16), w2_ref[...],
                preferred_element_type=jnp.float32) + b2_ref[...]
    out_ref[...] = jax.nn.sigmoid(y).astype(out_ref.dtype)


def prepare_params(w1, b1, w2, b2):
    """One-time weight glue, hoisted out of the hot path.

    Inputs use PyTorch nn.Linear layout: w1 (hidden, noise_dim), b1 (hidden,),
    w2 (input_dim, hidden), b2 (input_dim,). Returns:
      w1t: (noise_dim, Hp)      bf16   (Hp = round_up(hidden, 128), zero-padded)
      b1r: (1, Hp)              f32    (zero-padded)
      w2t: (Hp, input_dim)      bf16   (rows for padded hidden are zero)
      b2r: (1, input_dim)       f32
    Hidden-dim padding is exact: padded hidden units stay 0 through ReLU and
    hit all-zero w2t rows. The OUTPUT dim is left at its true width.
    """
    hidden, noise_dim = w1.shape
    input_dim = w2.shape[0]
    Hp = _round_up(hidden, LANE)

    w1t = jnp.zeros((noise_dim, Hp), jnp.bfloat16)
    w1t = w1t.at[:, :hidden].set(jnp.asarray(w1, jnp.float32).T.astype(jnp.bfloat16))
    b1r = jnp.zeros((1, Hp), jnp.float32).at[0, :hidden].set(jnp.asarray(b1, jnp.float32))
    w2t = jnp.zeros((Hp, input_dim), jnp.bfloat16)
    w2t = w2t.at[:hidden, :].set(jnp.asarray(w2, jnp.float32).T.astype(jnp.bfloat16))
    b2r = jnp.asarray(b2, jnp.float32).reshape(1, input_dim)
    return w1t, b1r, w2t, b2r


def simple_diffusion_generator(noise, w1t, b1r, w2t, b2r, *, block_b=4096):
    """noise: (B, noise_dim) f32; params from prepare_params(). Returns (B, input_dim) f32."""
    B, noise_dim = noise.shape
    Hp = w1t.shape[1]
    Od = w2t.shape[1]  # true input_dim (unpadded output width)

    # Batch tile: big enough to amortize the ~0.35 us/grid-step overhead
    # (>= ~0.75 MiB HBM traffic per step at bb=4096), rounded to 16 for
    # bf16-native sublane packing. When the batch allows it, keep >= 2 grid
    # steps so the "parallel" axis shards across both TensorCores on v7x.
    B16 = _round_up(B, 16)
    bb = min(block_b, B16)
    if bb >= B16 and B16 >= 32:
        bb = B16 // 2
    bb = _round_up(bb, 16)
    Bp = _round_up(B, bb)

    x = noise  # f32; bf16 cast happens inside the kernel (no wrapper pass).
    if Bp != B:
        x = jnp.pad(x, ((0, Bp - B), (0, 0)))

    grid = (Bp // bb,)
    out = pl.pallas_call(
        _mlp_kernel,
        out_shape=jax.ShapeDtypeStruct((Bp, Od), jnp.float32),
        grid_spec=pltpu.PrefetchScalarGridSpec(
            num_scalar_prefetch=0,
            grid=grid,
            in_specs=[
                pl.BlockSpec((bb, noise_dim), lambda i: (i, 0)),
                # Grid-invariant weight/bias tiles (tiny: default
                # double-buffering costs < ~50 KiB VMEM, negligible).
                pl.BlockSpec((noise_dim, Hp), lambda i: (0, 0)),
                pl.BlockSpec((1, Hp), lambda i: (0, 0)),
                pl.BlockSpec((Hp, Od), lambda i: (0, 0)),
                pl.BlockSpec((1, Od), lambda i: (0, 0)),
            ],
            # True-width output block: masked stores for Od < 128 are far
            # cheaper than 8x write amplification from lane-padding.
            out_specs=pl.BlockSpec((bb, Od), lambda i: (i, 0)),
        ),
        compiler_params=pltpu.CompilerParams(
            # Batch axis is embarrassingly parallel -> megacore sharding on
            # v7x whenever the grid has >= 2 steps.
            dimension_semantics=("parallel",)),
    )(x, w1t, b1r, w2t, b2r)

    # Only a row-slice remains (and only when the batch needed padding).
    return out[:B] if Bp != B else out


def reference(noise, w1, b1, w2, b2):
    h = jnp.maximum(noise @ w1.T + b1, 0.0)
    return jax.nn.sigmoid(h @ w2.T + b2)


if __name__ == "__main__":
    # Shapes implied by the module: noise_dim=32, hidden=64; pick input_dim=16, batch=8.
    B, NOISE_DIM, HIDDEN, INPUT_DIM = 8, 32, 64, 16

    key = jax.random.PRNGKey(0)
    k_noise, k_w1, k_b1, k_w2, k_b2 = jax.random.split(key, 5)

    # PyTorch nn.Linear parameter layout: W (out, in), b (out,)
    bound1 = 1.0 / (NOISE_DIM ** 0.5)
    w1 = jax.random.uniform(k_w1, (HIDDEN, NOISE_DIM), jnp.float32, -bound1, bound1)
    b1 = jax.random.uniform(k_b1, (HIDDEN,), jnp.float32, -bound1, bound1)
    bound2 = 1.0 / (HIDDEN ** 0.5)
    w2 = jax.random.uniform(k_w2, (INPUT_DIM, HIDDEN), jnp.float32, -bound2, bound2)
    b2 = jax.random.uniform(k_b2, (INPUT_DIM,), jnp.float32, -bound2, bound2)

    noise = jax.random.normal(k_noise, (B, NOISE_DIM), jnp.float32)

    # One-time weight prep (transpose + pad hidden + bf16 cast), outside the hot path.
    params = prepare_params(w1, b1, w2, b2)
    gen = jax.jit(functools.partial(simple_diffusion_generator, block_b=4096))

    out = gen(noise, *params)
    out = jax.block_until_ready(out)

    ref = reference(noise, w1, b1, w2, b2)
    assert out.shape == (B, INPUT_DIM)
    # bf16 matmul inputs (f32 accumulate) -> tolerance loosened vs f32 reference.
    max_err = float(jnp.max(jnp.abs(out - ref)))
    assert max_err < 2e-2, f"mismatch vs reference, max abs err = {max_err}"

    print("KERNEL_OK")
</pallas_src>

<mosaic_0001>
module attributes {stable_mosaic.version = 11 : i64} {
  func.func @_mlp_kernel(%arg0: i32, %arg1: memref<16x32xf32, #tpu.memory_space<vmem>>, %arg2: memref<32x128xbf16, #tpu.memory_space<vmem>>, %arg3: memref<1x128xf32, #tpu.memory_space<vmem>>, %arg4: memref<128x16xbf16, #tpu.memory_space<vmem>>, %arg5: memref<1x16xf32, #tpu.memory_space<vmem>>, %arg6: memref<16x16xf32, #tpu.memory_space<vmem>>) attributes {dimension_semantics = [#tpu.dimension_semantics<parallel>], iteration_bounds = array<i64: 1>, scalar_prefetch = 0 : i64, scratch_operands = 0 : i64, tpu.core_type = #tpu.core_type<tc>, window_params = [{transform_indices = @transform_0, window_bounds = array<i64: 16, 32>}, {pipeline_mode = #tpu.pipeline_mode<synchronous>, transform_indices = @transform_1, window_bounds = array<i64: 32, 128>}, {pipeline_mode = #tpu.pipeline_mode<synchronous>, transform_indices = @transform_2, window_bounds = array<i64: 1, 128>}, {pipeline_mode = #tpu.pipeline_mode<synchronous>, transform_indices = @transform_3, window_bounds = array<i64: 128, 16>}, {pipeline_mode = #tpu.pipeline_mode<synchronous>, transform_indices = @transform_4, window_bounds = array<i64: 1, 16>}, {transform_indices = @transform_5, window_bounds = array<i64: 16, 16>}]} {
    %c0 = arith.constant 0 : index
    %c0_0 = arith.constant 0 : index
    %0 = vector.load %arg1[%c0, %c0_0] : memref<16x32xf32, #tpu.memory_space<vmem>>, vector<16x32xf32>
    %1 = arith.truncf %0 : vector<16x32xf32> to vector<16x32xbf16>
    %c0_1 = arith.constant 0 : index
    %c0_2 = arith.constant 0 : index
    %2 = vector.load %arg2[%c0_1, %c0_2] : memref<32x128xbf16, #tpu.memory_space<vmem>>, vector<32x128xbf16>
    %cst = arith.constant dense<0.000000e+00> : vector<16x128xf32>
    %3 = tpu.matmul %1, %2, %cst {dimension_numbers = #tpu.dot_dimension_numbers<[1], [0], [0], [1], [0, 0, 1, 1], [], []>} : vector<16x32xbf16>, vector<32x128xbf16>, vector<16x128xf32> -> vector<16x128xf32>
    %c0_3 = arith.constant 0 : index
    %c0_4 = arith.constant 0 : index
    %4 = vector.load %arg3[%c0_3, %c0_4] : memref<1x128xf32, #tpu.memory_space<vmem>>, vector<1x128xf32>
    %5 = vector.broadcast %4 : vector<1x128xf32> to vector<16x128xf32>
    %6 = arith.addf %3, %5 : vector<16x128xf32>
    %cst_5 = arith.constant 0.000000e+00 : f32
    %7 = vector.broadcast %cst_5 : f32 to vector<16x128xf32>
    %8 = arith.maximumf %6, %7 : vector<16x128xf32>
    %9 = arith.truncf %8 : vector<16x128xf32> to vector<16x128xbf16>
    %c0_6 = arith.constant 0 : index
    %c0_7 = arith.constant 0 : index
    %10 = vector.load %arg4[%c0_6, %c0_7] : memref<128x16xbf16, #tpu.memory_space<vmem>>, vector<128x16xbf16>
    %cst_8 = arith.constant dense<0.000000e+00> : vector<16x16xf32>
    %11 = tpu.matmul %9, %10, %cst_8 {dimension_numbers = #tpu.dot_dimension_numbers<[1], [0], [0], [1], [0, 0, 1, 1], [], []>} : vector<16x128xbf16>, vector<128x16xbf16>, vector<16x16xf32> -> vector<16x16xf32>
    %c0_9 = arith.constant 0 : index
    %c0_10 = arith.constant 0 : index
    %12 = vector.load %arg5[%c0_9, %c0_10] : memref<1x16xf32, #tpu.memory_space<vmem>>, vector<1x16xf32>
    %13 = vector.broadcast %12 : vector<1x16xf32> to vector<16x16xf32>
    %14 = arith.addf %11, %13 : vector<16x16xf32>
    %15 = arith.negf %14 : vector<16x16xf32>
    %16 = math.exp %15 : vector<16x16xf32>
    %cst_11 = arith.constant 1.000000e+00 : f32
    %17 = vector.broadcast %cst_11 : f32 to vector<16x16xf32>
    %18 = arith.addf %17, %16 : vector<16x16xf32>
    %19 = arith.divf %17, %18 : vector<16x16xf32>
    %c0_12 = arith.constant 0 : index
    %c0_13 = arith.constant 0 : index
    %20 = vector.load %arg6[%c0_12, %c0_13] : memref<16x16xf32, #tpu.memory_space<vmem>>, vector<16x16xf32>
    tpu.vector_store %arg6[%c0_12, %c0_13], %19 {strides = array<i32>} : memref<16x16xf32, #tpu.memory_space<vmem>>, vector<16x16xf32>,
    return
  }
  func.func @transform_0(%arg0: i32) -> (i32, i32) {
    %c0_i32 = arith.constant 0 : i32
    %c0_i32_0 = arith.constant 0 : i32
    return %arg0, %c0_i32 : i32, i32
  }
  func.func @transform_1(%arg0: i32) -> (i32, i32) {
    %c0_i32 = arith.constant 0 : i32
    %c0_i32_0 = arith.constant 0 : i32
    %c0_i32_1 = arith.constant 0 : i32
    return %c0_i32, %c0_i32_0 : i32, i32
  }
  func.func @transform_2(%arg0: i32) -> (i32, i32) {
    %c0_i32 = arith.constant 0 : i32
    %c0_i32_0 = arith.constant 0 : i32
    %c0_i32_1 = arith.constant 0 : i32
    return %c0_i32, %c0_i32_0 : i32, i32
  }
  func.func @transform_3(%arg0: i32) -> (i32, i32) {
    %c0_i32 = arith.constant 0 : i32
    %c0_i32_0 = arith.constant 0 : i32
    %c0_i32_1 = arith.constant 0 : i32
    return %c0_i32, %c0_i32_0 : i32, i32
  }
  func.func @transform_4(%arg0: i32) -> (i32, i32) {
    %c0_i32 = arith.constant 0 : i32
    %c0_i32_0 = arith.constant 0 : i32
    %c0_i32_1 = arith.constant 0 : i32
    return %c0_i32, %c0_i32_0 : i32, i32
  }
  func.func @transform_5(%arg0: i32) -> (i32, i32) {
    %c0_i32 = arith.constant 0 : i32
    %c0_i32_0 = arith.constant 0 : i32
    return %arg0, %c0_i32 : i32, i32
  }
}

</mosaic_0001>

<llo_original>
// kernel: simple_diffusion_generator.1
$region0: #{simple_diffusion_generator.1}
  #allocation0 [shape = 'u32[]', space=smem, size = 0x4, offset = 0x4, fixed_abs, tag = 'smem constant byte address 0x4 - core index']
  #allocation1 [shape = 'u32[72,128]{1,0:T(1,128)}', space=vmem, size = 0x9000, scoped, tag = 'internal scratch']
  %s0 = inlined_call_operand.vmem [shape: f32[16,32], index: 0, kind: input, shape index: {}]
  %s1 = inlined_call_operand.vmem [shape: bf16[32,128], index: 1, kind: input, shape index: {}]
  %s2 = inlined_call_operand.vmem [shape: f32[1,128], index: 2, kind: input, shape index: {}]
  %s3 = inlined_call_operand.vmem [shape: bf16[128,16], index: 3, kind: input, shape index: {}]
  %s4 = inlined_call_operand.vmem [shape: f32[1,16], index: 4, kind: input, shape index: {}]
  %s5 = inlined_call_operand.vmem [shape: f32[16,16], index: 5, kind: output, shape index: {}]
  %s6 = sld [smem:[#allocation0]]
  $region30: #{simple_diffusion_generator.1} parent=0
    _
  %s8 = ssub.s32 1, %s6
  %s9 = scalar_select 0, %s8, %s6
  // Predicated region
  $region2: #{simple_diffusion_generator.1} parent=0 // pred_check
    _
  $region3: #{simple_diffusion_generator.1} parent=0 // pred_check_branch
    %11 = sbr.rel (0) target = $region5
  $region4: #{simple_diffusion_generator.1} parent=0 // pred_region
    _
  $region5: #{simple_diffusion_generator.1} parent=0 // pred_fallthru
    _
  // Predicated region
  $region6: #{simple_diffusion_generator.1} parent=0 // pred_check
    _
  $region7: #{simple_diffusion_generator.1} parent=0 // pred_check_branch
    %13 = sbr.rel (0) target = $region9
  $region8: #{simple_diffusion_generator.1} parent=0 // pred_region
    _
  $region9: #{simple_diffusion_generator.1} parent=0 // pred_fallthru
    _
  // Predicated region
  $region10: #{simple_diffusion_generator.1} parent=0 // pred_check
    _
  $region11: #{simple_diffusion_generator.1} parent=0 // pred_check_branch
    %15 = sbr.rel (0) target = $region13
  $region12: #{simple_diffusion_generator.1} parent=0 // pred_region
    _
  $region13: #{simple_diffusion_generator.1} parent=0 // pred_fallthru
    _
  // Predicated region
  $region14: #{simple_diffusion_generator.1} parent=0 // pred_check
    _
  $region15: #{simple_diffusion_generator.1} parent=0 // pred_check_branch
    %17 = sbr.rel (0) target = $region17
  $region16: #{simple_diffusion_generator.1} parent=0 // pred_region
    _
  $region17: #{simple_diffusion_generator.1} parent=0 // pred_fallthru
    _
  // Predicated region
  $region18: #{simple_diffusion_generator.1} parent=0 // pred_check
    _
  $region19: #{simple_diffusion_generator.1} parent=0 // pred_check_branch
    %19 = sbr.rel (0) target = $region21
  $region20: #{simple_diffusion_generator.1} parent=0 // pred_region
    _
  $region21: #{simple_diffusion_generator.1} parent=0 // pred_fallthru
    _
  %v21 = vld [vmem:[%s0] sm:$0xff]
  %v22 = vld [vmem:[%s0 + $0x8] sm:$0xff]
  %v23 = vpack.c.bf16 %v22, %v21
  %v24 = vld [vmem:[%s1] sm:$0xf]
  %v25 = vld [vmem:[%s1 + $0x4] sm:$0xf]
  %v26 = vld [vmem:[%s1 + $0x8] sm:$0xf]
  %v27 = vld [vmem:[%s1 + $0xc] sm:$0xf]
  %v28 = vld [vmem:[%s2] sm:$0x1]
  %v30 = vperm.slane %v28, 0
  %v36 = vunpack.c.l.b16 %v24
  %v37 = vunpack.c.l.b16 %v25
  %v38 = vunpack.c.l.b16 %v26
  %v39 = vunpack.c.l.b16 %v27
  %v40 = vpack.c.b16 %v37, %v36
  %v41 = vpack.c.b16 %v39, %v38
  %vm44 = vcmask 261120
  %v46 = vsel %vm44, %v23, 0
  %48 = vmatpush.bf16.msra.mxu0 0
  %49 = vmatpush.bf16.msra.mxu0 0
  %50 = vmatpush.bf16.msra.mxu0 0
  %51 = vmatpush.bf16.msra.mxu0 0
  %52 = vmatpush.bf16.msra.mxu0 0
  %53 = vmatpush.bf16.msra.mxu0 0
  %54 = vmatpush.bf16.msra.mxu0 %v41
  %55 = vmatpush.bf16.msra.mxu0 %v40
  %56 = vmatmul.bf16.gmra.mxu0 %v46
  %v57 = vpop.f32.mrf.mxu0
  %v58 = vadd.f32 %v30, %v57
  %v59 = vpop.f32.mrf.mxu0
  %v60 = vadd.f32 %v30, %v59
  %61 = vdwg.mxu0
  %v62 = vmax.f32 %v58, 0.0
  %v63 = vmax.f32 %v60, 0.0
  %v64 = vpack.c.bf16 %v63, %v62
  %v65 = vld [vmem:[%s3] sm:$0xf]
  %v66 = vld [vmem:[%s3 + $0x4] sm:$0xf]
  %v67 = vld [vmem:[%s3 + $0x8] sm:$0xf]
  %v68 = vld [vmem:[%s3 + $0xc] sm:$0xf]
  %v69 = vld [vmem:[%s3 + $0x10] sm:$0xf]
  %v70 = vld [vmem:[%s3 + $0x14] sm:$0xf]
  %v71 = vld [vmem:[%s3 + $0x18] sm:$0xf]
  %v72 = vld [vmem:[%s3 + $0x1c] sm:$0xf]
  %v73 = vld [vmem:[%s3 + $0x20] sm:$0xf]
  %v74 = vld [vmem:[%s3 + $0x24] sm:$0xf]
  %v75 = vld [vmem:[%s3 + $0x28] sm:$0xf]
  %v76 = vld [vmem:[%s3 + $0x2c] sm:$0xf]
  %v77 = vld [vmem:[%s3 + $0x30] sm:$0xf]
  %v78 = vld [vmem:[%s3 + $0x34] sm:$0xf]
  %v79 = vld [vmem:[%s3 + $0x38] sm:$0xf]
  %v80 = vld [vmem:[%s3 + $0x3c] sm:$0xf]
  %v81 = vld [vmem:[%s4] sm:$0x1]
  %v83 = vperm.slane %v81, 0
  %v101 = vunpack.c.l.b16 %v65
  %v102 = vunpack.c.l.b16 %v66
  %v103 = vunpack.c.l.b16 %v67
  %v104 = vunpack.c.l.b16 %v68
  %v105 = vunpack.c.l.b16 %v69
  %v106 = vunpack.c.l.b16 %v70
  %v107 = vunpack.c.l.b16 %v71
  %v108 = vunpack.c.l.b16 %v72
  %v109 = vunpack.c.l.b16 %v73
  %v110 = vunpack.c.l.b16 %v74
  %v111 = vunpack.c.l.b16 %v75
  %v112 = vunpack.c.l.b16 %v76
  %v113 = vunpack.c.l.b16 %v77
  %v114 = vunpack.c.l.b16 %v78
  %v115 = vunpack.c.l.b16 %v79
  %v116 = vunpack.c.l.b16 %v80
  %v117 = vpack.c.b16 %v102, %v101
  %v118 = vpack.c.b16 %v104, %v103
  %v119 = vpack.c.b16 %v106, %v105
  %v120 = vpack.c.b16 %v108, %v107
  %v121 = vpack.c.b16 %v110, %v109
  %v122 = vpack.c.b16 %v112, %v111
  %v123 = vpack.c.b16 %v114, %v113
  %v124 = vpack.c.b16 %v116, %v115
  %133 = vmatpush.bf16.msra.mxu0 %v124
  %134 = vmatpush.bf16.msra.mxu0 %v123
  %135 = vmatpush.bf16.msra.mxu0 %v122
  %136 = vmatpush.bf16.msra.mxu0 %v121
  %137 = vmatpush.bf16.msra.mxu0 %v120
  %138 = vmatpush.bf16.msra.mxu0 %v119
  %139 = vmatpush.bf16.msra.mxu0 %v118
  %140 = vmatpush.bf16.msra.mxu0 %v117
  %141 = vmatmul.bf16.gmra.mxu0 %v64
  %v142 = vpop.f32.mrf.mxu0
  %v143 = vadd.f32 %v83, %v142
  %v144 = vpop.f32.mrf.mxu0
  %v145 = vadd.f32 %v83, %v144
  %146 = vdwg.mxu0
  %v147 = vxor.u32 %v143, 2147483648
  %v148 = vxor.u32 %v145, 2147483648
  %v149 = vmul.f32 %v147, 1.442695
  %v150 = vpow.pop %v149
  %v151 = vmul.f32 %v148, 1.442695
  %v152 = vpow.pop %v151
  %v153 = vadd.f32 %v150, 1.0
  %v154 = vadd.f32 %v152, 1.0
  %v155 = vrcp.pop %v153
  %v156 = vmul.f32 %v153, %v155
  %v157 = vsub.f32 1.0, %v156
  %v158 = vmul.f32 %v155, %v157
  %v159 = vadd.f32 %v155, %v158
  %vm160 = vweird.f32 %v153
  %vm161 = vweird.f32 %v155
  %vm162 = vmor %vm160, %vm161
  %v163 = vsel %vm162, %v155, %v159
  %v164 = vand.u32 2147483647, %v153
  %vm165 = vcmp.eq.f32.partialorder %v164, 8.507059e+37
  %v166 = vand.u32 %v153, 2147483648
  %v167 = vor.u32 1.1754944e-38, %v166
  %v168 = vsel %vm165, %v167, %v163
  %v169 = vmul.f32 1.0, %v168
  %v170 = vrcp.pop %v154
  %v171 = vmul.f32 %v154, %v170
  %v172 = vsub.f32 1.0, %v171
  %v173 = vmul.f32 %v170, %v172
  %v174 = vadd.f32 %v170, %v173
  %vm175 = vweird.f32 %v154
  %vm176 = vweird.f32 %v170
  %vm177 = vmor %vm175, %vm176
  %v178 = vsel %vm177, %v170, %v174
  %v179 = vand.u32 2147483647, %v154
  %vm180 = vcmp.eq.f32.partialorder %v179, 8.507059e+37
  %v181 = vand.u32 %v154, 2147483648
  %v182 = vor.u32 1.1754944e-38, %v181
  %v183 = vsel %vm180, %v182, %v178
  %v184 = vmul.f32 1.0, %v183
  %vm185 = vcmask 130048
  %186 = vst.msk [vmem:[%s5] sm:$0xff] %vm185, %v169
  %187 = vst.msk [vmem:[%s5 + $0x8] sm:$0xff] %vm185, %v184
  // Predicated region
  $region22: #{simple_diffusion_generator.1} parent=0 // pred_check
    _
  $region23: #{simple_diffusion_generator.1} parent=0 // pred_check_branch
    %189 = sbr.rel (0) target = $region25
  $region24: #{simple_diffusion_generator.1} parent=0 // pred_region
    _
  $region25: #{simple_diffusion_generator.1} parent=0 // pred_fallthru
    _
  // Predicated region
  $region26: #{simple_diffusion_generator.1} parent=0 // pred_check
    _
  $region27: #{simple_diffusion_generator.1} parent=0 // pred_check_branch
    %191 = sbr.rel (0) target = $region29
  $region28: #{simple_diffusion_generator.1} parent=0 // pred_region
    _
  $region29: #{simple_diffusion_generator.1} parent=0 // pred_fallthru
    _

</llo_original>
